<compile_context>
chip_gen: v6e
topology: v6e:2x2x1
jax: 0.10.0
libtpu: 0.0.40
codegen_flags: <defaults>
</compile_context>

<pallas_src>
import functools

import jax
import jax.numpy as jnp
from jax.experimental import pallas as pl
from jax.experimental.pallas import tpu as pltpu

STATE_SPACE = 61
F_IN = STATE_SPACE * 2      # 122
F_HID = STATE_SPACE * 4     # 244
F_OUT = STATE_SPACE         # 61

# Lane-aligned (multiple-of-128) padded widths for hidden / output.
F_HID_P = 256
F_OUT_P = 128

NEG_BIAS = -1e30            # pad bias -> softmax gives exactly 0 on padded lanes
DEFAULT_TILE_B = 4096       # ~20 MiB peak VMEM at this tile (incl. double buffers)
VMEM_LIMIT_BYTES = 48 * 1024 * 1024   # > scoped defaults, < v7x 64 MiB physical
SMALL_BATCH = 128           # below this, don't bother splitting the grid


def policy_kernel(x_ref, w1_ref, b1_ref, w2_ref, b2_ref, o_ref):
    # Cast raw f32 activations to bf16 in-kernel (cheap VPU op under DMA slack).
    x = x_ref[...].astype(jnp.bfloat16)                       # (tb, 122)
    # affline1: x @ W1 + b1  (bf16 operands, f32 accumulation on the MXU;
    # K=122 is handled by Mosaic's internal padding/masking).
    h = jnp.dot(x, w1_ref[...],
                preferred_element_type=jnp.float32) + b1_ref[...]
    # dropout (eval mode) -> identity; relu
    h = jnp.maximum(h, 0.0)
    # affline2: h @ W2 + b2 (padded output lanes carry a -1e30 bias)
    s = jnp.dot(h.astype(jnp.bfloat16), w2_ref[...],
                preferred_element_type=jnp.float32) + b2_ref[...]
    # numerically stable softmax over the feature axis
    m = jnp.max(s, axis=1, keepdims=True)
    e = jnp.exp(s - m)
    denom = jnp.sum(e, axis=1, keepdims=True)
    o_ref[...] = (e * pl.reciprocal(denom, approx=False)).astype(o_ref.dtype)


def prepare_params(w1, b1, w2, b2):
    """Pad params once to MXU/lane-friendly shapes; cast weights to bf16.

    Weights are stored pre-transposed as [fan_in, fan_out] so the kernel does
    plain x @ W (equivalent to torch's x @ W.T + b).  W1 keeps its natural
    fan-in of 122; only the hidden / output dims are padded.  Padded hidden
    columns of W1 and padded output columns of W2 are zero; padded output
    lanes of b2 are -1e30 so softmax emits exact zeros there.
    """
    w1p = jnp.zeros((F_IN, F_HID_P), jnp.bfloat16)
    w1p = w1p.at[:, :F_HID].set(w1.astype(jnp.bfloat16))
    b1p = jnp.zeros((1, F_HID_P), jnp.float32).at[:, :F_HID].set(b1)
    w2p = jnp.zeros((F_HID_P, F_OUT_P), jnp.bfloat16)
    w2p = w2p.at[:F_HID, :F_OUT].set(w2.astype(jnp.bfloat16))
    b2p = jnp.full((1, F_OUT_P), NEG_BIAS, jnp.float32).at[:, :F_OUT].set(b2)
    return w1p, b1p, w2p, b2p


def _pick_tile(B, tile_b):
    """Batch tile: multiple of 8 (or == B); >=2 grid steps for mid/large B."""
    if B <= SMALL_BATCH:
        return B                      # one tiny step; splitting is pure overhead
    if B <= tile_b:
        half = (B + 1) // 2           # split so both v7x TensorCores get a step
        half = ((half + 7) // 8) * 8
        return min(tile_b, half)
    return tile_b


@functools.partial(jax.jit, static_argnames=("tile_b",))
def policy_forward(x, w1p, b1p, w2p, b2p, *, tile_b=DEFAULT_TILE_B):
    """x: [B, F_IN] float32 -> probs [B, F_OUT_P] float32.

    Columns 0..60 are the softmax over the 61 actions; columns 61..127 are
    EXACT zeros (so sampling / argmax on the padded array is identical to the
    61-wide result).  Slice [:, :F_OUT] only if you truly need the 61-wide
    view — that slice is an extra HBM pass.
    """
    B = x.shape[0]
    tb = _pick_tile(B, tile_b)
    grid = (pl.cdiv(B, tb),)

    return pl.pallas_call(
        policy_kernel,
        out_shape=jax.ShapeDtypeStruct((B, F_OUT_P), jnp.float32),
        grid=grid,
        in_specs=[
            pl.BlockSpec((tb, F_IN), lambda i: (i, 0)),           # x (streamed f32)
            pl.BlockSpec((F_IN, F_HID_P), lambda i: (0, 0)),      # W1 (resident)
            pl.BlockSpec((1, F_HID_P), lambda i: (0, 0)),         # b1
            pl.BlockSpec((F_HID_P, F_OUT_P), lambda i: (0, 0)),   # W2
            pl.BlockSpec((1, F_OUT_P), lambda i: (0, 0)),         # b2
        ],
        out_specs=pl.BlockSpec((tb, F_OUT_P), lambda i: (i, 0)),
        compiler_params=pltpu.CompilerParams(
            dimension_semantics=("parallel",),
            vmem_limit_bytes=VMEM_LIMIT_BYTES),
    )(x, w1p, b1p, w2p, b2p)


def init_params(key):
    """Deterministic init mimicking nn.Linear default (U[-1/sqrt(fan_in), +])."""
    k1, k2, k3, k4 = jax.random.split(key, 4)
    bound1 = 1.0 / jnp.sqrt(jnp.float32(F_IN))
    bound2 = 1.0 / jnp.sqrt(jnp.float32(F_HID))
    # stored as [fan_in, fan_out] (transpose of torch's [out, in])
    w1 = jax.random.uniform(k1, (F_IN, F_HID), jnp.float32, -bound1, bound1)
    b1 = jax.random.uniform(k2, (F_HID,), jnp.float32, -bound1, bound1)
    w2 = jax.random.uniform(k3, (F_HID, F_OUT), jnp.float32, -bound2, bound2)
    b2 = jax.random.uniform(k4, (F_OUT,), jnp.float32, -bound2, bound2)
    return w1, b1, w2, b2


def reference_fp32(x, w1, b1, w2, b2):
    h = jnp.maximum(x @ w1 + b1, 0.0)
    return jax.nn.softmax(h @ w2 + b2, axis=1)


def reference_bf16(x, w1, b1, w2, b2):
    """Same math as the kernel: bf16 operands, f32 accumulation + softmax."""
    h = jnp.dot(x.astype(jnp.bfloat16), w1.astype(jnp.bfloat16),
                preferred_element_type=jnp.float32) + b1
    h = jnp.maximum(h, 0.0)
    s = jnp.dot(h.astype(jnp.bfloat16), w2.astype(jnp.bfloat16),
                preferred_element_type=jnp.float32) + b2
    return jax.nn.softmax(s, axis=1)


if __name__ == "__main__":
    key = jax.random.PRNGKey(0)
    kx, kx2, kp = jax.random.split(key, 3)
    w1, b1, w2, b2 = init_params(kp)
    params = prepare_params(w1, b1, w2, b2)

    # Small batch (typical single-step policy eval).
    B = 2
    x = jax.random.normal(kx, (B, F_IN), jnp.float32)
    probs_pad = jax.block_until_ready(policy_forward(x, *params))
    assert probs_pad.shape == (B, F_OUT_P)
    # Padded lanes are exact zeros -> padded output is safe to sample from.
    assert jnp.all(probs_pad[:, F_OUT:] == 0.0)
    probs = probs_pad[:, :F_OUT]          # 61-wide view (verification only)
    assert jnp.allclose(jnp.sum(probs, axis=1), 1.0, atol=1e-5)
    assert jnp.allclose(probs, reference_bf16(x, w1, b1, w2, b2),
                        atol=1e-4, rtol=1e-3)
    # vs full-f32 math: only bf16 quantization error remains.
    assert jnp.allclose(probs, reference_fp32(x, w1, b1, w2, b2), atol=1e-2)

    # Larger ragged batch to exercise the multi-step grid + masked last tile.
    B2 = 300
    x2 = jax.random.normal(kx2, (B2, F_IN), jnp.float32)
    probs2_pad = jax.block_until_ready(policy_forward(x2, *params, tile_b=128))
    assert probs2_pad.shape == (B2, F_OUT_P)
    assert jnp.all(probs2_pad[:, F_OUT:] == 0.0)
    probs2 = probs2_pad[:, :F_OUT]
    assert jnp.allclose(jnp.sum(probs2, axis=1), 1.0, atol=1e-5)
    assert jnp.allclose(probs2, reference_bf16(x2, w1, b1, w2, b2),
                        atol=1e-4, rtol=1e-3)

    print("KERNEL_OK")
</pallas_src>

<mosaic_0001>
module attributes {stable_mosaic.version = 11 : i64} {
  func.func @policy_kernel(%arg0: i32, %arg1: memref<2x122xf32, #tpu.memory_space<vmem>>, %arg2: memref<122x256xbf16, #tpu.memory_space<vmem>>, %arg3: memref<1x256xf32, #tpu.memory_space<vmem>>, %arg4: memref<256x128xbf16, #tpu.memory_space<vmem>>, %arg5: memref<1x128xf32, #tpu.memory_space<vmem>>, %arg6: memref<2x128xf32, #tpu.memory_space<vmem>>) attributes {dimension_semantics = [#tpu.dimension_semantics<parallel>], iteration_bounds = array<i64: 1>, scalar_prefetch = 0 : i64, scratch_operands = 0 : i64, tpu.core_type = #tpu.core_type<tc>, window_params = [{transform_indices = @transform_0, window_bounds = array<i64: 2, 122>}, {pipeline_mode = #tpu.pipeline_mode<synchronous>, transform_indices = @transform_1, window_bounds = array<i64: 122, 256>}, {pipeline_mode = #tpu.pipeline_mode<synchronous>, transform_indices = @transform_2, window_bounds = array<i64: 1, 256>}, {pipeline_mode = #tpu.pipeline_mode<synchronous>, transform_indices = @transform_3, window_bounds = array<i64: 256, 128>}, {pipeline_mode = #tpu.pipeline_mode<synchronous>, transform_indices = @transform_4, window_bounds = array<i64: 1, 128>}, {transform_indices = @transform_5, window_bounds = array<i64: 2, 128>}]} {
    %c0 = arith.constant 0 : index
    %c0_0 = arith.constant 0 : index
    %0 = vector.load %arg1[%c0, %c0_0] : memref<2x122xf32, #tpu.memory_space<vmem>>, vector<2x122xf32>
    %1 = arith.truncf %0 : vector<2x122xf32> to vector<2x122xbf16>
    %c0_1 = arith.constant 0 : index
    %c0_2 = arith.constant 0 : index
    %2 = vector.load %arg2[%c0_1, %c0_2] : memref<122x256xbf16, #tpu.memory_space<vmem>>, vector<122x256xbf16>
    %cst = arith.constant dense<0.000000e+00> : vector<2x256xf32>
    %3 = tpu.matmul %1, %2, %cst {dimension_numbers = #tpu.dot_dimension_numbers<[1], [0], [0], [1], [0, 0, 1, 1], [], []>} : vector<2x122xbf16>, vector<122x256xbf16>, vector<2x256xf32> -> vector<2x256xf32>
    %c0_3 = arith.constant 0 : index
    %c0_4 = arith.constant 0 : index
    %4 = vector.load %arg3[%c0_3, %c0_4] : memref<1x256xf32, #tpu.memory_space<vmem>>, vector<1x256xf32>
    %5 = vector.broadcast %4 : vector<1x256xf32> to vector<2x256xf32>
    %6 = arith.addf %3, %5 : vector<2x256xf32>
    %cst_5 = arith.constant 0.000000e+00 : f32
    %7 = vector.broadcast %cst_5 : f32 to vector<2x256xf32>
    %8 = arith.maximumf %6, %7 : vector<2x256xf32>
    %9 = arith.truncf %8 : vector<2x256xf32> to vector<2x256xbf16>
    %c0_6 = arith.constant 0 : index
    %c0_7 = arith.constant 0 : index
    %10 = vector.load %arg4[%c0_6, %c0_7] : memref<256x128xbf16, #tpu.memory_space<vmem>>, vector<256x128xbf16>
    %cst_8 = arith.constant dense<0.000000e+00> : vector<2x128xf32>
    %11 = tpu.matmul %9, %10, %cst_8 {dimension_numbers = #tpu.dot_dimension_numbers<[1], [0], [0], [1], [0, 0, 1, 1], [], []>} : vector<2x256xbf16>, vector<256x128xbf16>, vector<2x128xf32> -> vector<2x128xf32>
    %c0_9 = arith.constant 0 : index
    %c0_10 = arith.constant 0 : index
    %12 = vector.load %arg5[%c0_9, %c0_10] : memref<1x128xf32, #tpu.memory_space<vmem>>, vector<1x128xf32>
    %13 = vector.broadcast %12 : vector<1x128xf32> to vector<2x128xf32>
    %14 = arith.addf %11, %13 : vector<2x128xf32>
    %cst_11 = arith.constant dense<0xFF800000> : vector<2xf32>
    %15 = vector.multi_reduction <maximumf>, %14, %cst_11 [1] : vector<2x128xf32> to vector<2xf32>
    %16 = vector.shape_cast %15 : vector<2xf32> to vector<2x1xf32>
    %17 = vector.broadcast %16 : vector<2x1xf32> to vector<2x128xf32>
    %18 = arith.subf %14, %17 : vector<2x128xf32>
    %19 = math.exp %18 : vector<2x128xf32>
    %cst_12 = arith.constant dense<0.000000e+00> : vector<2xf32>
    %20 = vector.multi_reduction <add>, %19, %cst_12 [1] : vector<2x128xf32> to vector<2xf32>
    %21 = vector.shape_cast %20 : vector<2xf32> to vector<2x1xf32>
    %22 = tpu.reciprocal %21 : vector<2x1xf32> -> vector<2x1xf32>
    %23 = vector.broadcast %22 : vector<2x1xf32> to vector<2x128xf32>
    %24 = arith.mulf %19, %23 : vector<2x128xf32>
    %c0_13 = arith.constant 0 : index
    %c0_14 = arith.constant 0 : index
    %25 = vector.load %arg6[%c0_13, %c0_14] : memref<2x128xf32, #tpu.memory_space<vmem>>, vector<2x128xf32>
    tpu.vector_store %arg6[%c0_13, %c0_14], %24 {strides = array<i32>} : memref<2x128xf32, #tpu.memory_space<vmem>>, vector<2x128xf32>,
    return
  }
  func.func @transform_0(%arg0: i32) -> (i32, i32) {
    %c0_i32 = arith.constant 0 : i32
    %c0_i32_0 = arith.constant 0 : i32
    return %arg0, %c0_i32 : i32, i32
  }
  func.func @transform_1(%arg0: i32) -> (i32, i32) {
    %c0_i32 = arith.constant 0 : i32
    %c0_i32_0 = arith.constant 0 : i32
    %c0_i32_1 = arith.constant 0 : i32
    return %c0_i32, %c0_i32_0 : i32, i32
  }
  func.func @transform_2(%arg0: i32) -> (i32, i32) {
    %c0_i32 = arith.constant 0 : i32
    %c0_i32_0 = arith.constant 0 : i32
    %c0_i32_1 = arith.constant 0 : i32
    return %c0_i32, %c0_i32_0 : i32, i32
  }
  func.func @transform_3(%arg0: i32) -> (i32, i32) {
    %c0_i32 = arith.constant 0 : i32
    %c0_i32_0 = arith.constant 0 : i32
    %c0_i32_1 = arith.constant 0 : i32
    return %c0_i32, %c0_i32_0 : i32, i32
  }
  func.func @transform_4(%arg0: i32) -> (i32, i32) {
    %c0_i32 = arith.constant 0 : i32
    %c0_i32_0 = arith.constant 0 : i32
    %c0_i32_1 = arith.constant 0 : i32
    return %c0_i32, %c0_i32_0 : i32, i32
  }
  func.func @transform_5(%arg0: i32) -> (i32, i32) {
    %c0_i32 = arith.constant 0 : i32
    %c0_i32_0 = arith.constant 0 : i32
    return %arg0, %c0_i32 : i32, i32
  }
}

</mosaic_0001>

<llo_original>
// kernel: policy_forward.1
$region0: #{policy_forward.1}
  #allocation0 [shape = 'u32[]', space=smem, size = 0x4, offset = 0x4, fixed_abs, tag = 'smem constant byte address 0x4 - core index']
  #allocation1 [shape = 'u32[144,128]{1,0:T(1,128)}', space=vmem, size = 0x12000, scoped, tag = 'internal scratch']
  %s0 = inlined_call_operand.hbm [shape: f32[2,122], index: 0, kind: input, shape index: {}]
  %s1 = inlined_call_operand.hbm [shape: bf16[122,256], index: 1, kind: input, shape index: {}]
  %s2 = inlined_call_operand.vmem [shape: f32[1,256], index: 2, kind: input, shape index: {}]
  %s3 = inlined_call_operand.hbm [shape: bf16[256,128], index: 3, kind: input, shape index: {}]
  %s4 = inlined_call_operand.vmem [shape: f32[1,128], index: 4, kind: input, shape index: {}]
  %s5 = inlined_call_operand.hbm [shape: f32[2,128], index: 5, kind: output, shape index: {}]
  %s6 = sld [smem:[#allocation0]]
  $region42: #{policy_forward.1} parent=0
    _
  %s8 = ssub.s32 1, %s6
  %s9 = scalar_select 0, %s8, %s6
  $region1: #{policy_forward.1} parent=0
    #allocation2 [shape = 'u8[1024]{0}', space=vmem, size = 0x400, scoped, tag = 'input window, operand 0, single buffered']
    #allocation3 [shape = 's32[1]{0}', space=sflag, size = 0x4, scoped, tag = 'scoped memory for policy_forward.1']
    #allocation4 [shape = 's32[1]{0}', space=sflag, size = 0x4, scoped, tag = 'scoped memory for policy_forward.1']
    #allocation5 [shape = 'u8[65536]{0}', space=vmem, size = 0x10000, scoped, tag = 'input window, operand 1, single buffered']
    #allocation6 [shape = 's32[1]{0}', space=sflag, size = 0x4, scoped, tag = 'scoped memory for policy_forward.1']
    #allocation7 [shape = 'u8[65536]{0}', space=vmem, size = 0x10000, scoped, tag = 'input window, operand 3, single buffered']
    #allocation8 [shape = 'u8[1024]{0}', space=vmem, size = 0x400, scoped, tag = 'output window, operand 0, single buffered']
    %10 = vsyncpa [#allocation3], 0
    %11 = vsyncpa [#allocation6], 0
    %12 = vsyncpa [#allocation4], 0
    // Predicated region
    $region2: #{policy_forward.1} parent=1 // pred_check
      _
    $region3: #{policy_forward.1} parent=1 // pred_check_branch
      %14 = sbr.rel (0) target = $region5
    $region4: #{policy_forward.1} parent=1 // pred_region
      %s16 = ssub.s32 32, 32
      %17 = vsyncadd [#allocation3], %s16
      %s19 = sshll.u32 [#allocation2], 4
      %s20 = int_to_ptr.vmem [resolvable:$true] %s19
      %22 = dma.hbm_to_vmem [thread:$0]  %s0, 32, %s20, [#allocation3]
    $region5: #{policy_forward.1} parent=1 // pred_fallthru
      _
    // Predicated region
    $region6: #{policy_forward.1} parent=1 // pred_check
      _
    $region7: #{policy_forward.1} parent=1 // pred_check_branch
      %24 = sbr.rel (0) target = $region9
    $region8: #{policy_forward.1} parent=1 // pred_region
      %s26 = ssub.s32 2048, 2048
      %27 = vsyncadd [#allocation6], %s26
      %s28 = sshll.u32 [#allocation5], 4
      %s29 = int_to_ptr.vmem [resolvable:$true] %s28
      %34 = dma.hbm_to_vmem [thread:$0]  %s1, 2048, %s29, [#allocation6], 128, 128, 8
    $region9: #{policy_forward.1} parent=1 // pred_fallthru
      _
    // Predicated region
    $region10: #{policy_forward.1} parent=1 // pred_check
      _
    $region11: #{policy_forward.1} parent=1 // pred_check_branch
      %36 = sbr.rel (0) target = $region13
    $region12: #{policy_forward.1} parent=1 // pred_region
      _
    $region13: #{policy_forward.1} parent=1 // pred_fallthru
      _
    // Predicated region
    $region14: #{policy_forward.1} parent=1 // pred_check
      _
    $region15: #{policy_forward.1} parent=1 // pred_check_branch
      %38 = sbr.rel (0) target = $region17
    $region16: #{policy_forward.1} parent=1 // pred_region
      %s40 = ssub.s32 2048, 2048
      %41 = vsyncadd [#allocation6], %s40
      %s42 = sshll.u32 [#allocation7], 4
      %s43 = int_to_ptr.vmem [resolvable:$true] %s42
      %48 = dma.hbm_to_vmem [thread:$0]  %s3, 2048, %s43, [#allocation6], 64, 64, 4
    $region17: #{policy_forward.1} parent=1 // pred_fallthru
      _
    // Predicated region
    $region18: #{policy_forward.1} parent=1 // pred_check
      _
    $region19: #{policy_forward.1} parent=1 // pred_check_branch
      %50 = sbr.rel (0) target = $region21
    $region20: #{policy_forward.1} parent=1 // pred_region
      _
    $region21: #{policy_forward.1} parent=1 // pred_fallthru
      _
    // Predicated region
    $region22: #{policy_forward.1} parent=1 // pred_check
      _
    $region23: #{policy_forward.1} parent=1 // pred_check_branch
      %52 = sbr.rel (0) target = $region25
    $region24: #{policy_forward.1} parent=1 // pred_region
      %53 = dma.done [#allocation3], 32
    $region25: #{policy_forward.1} parent=1 // pred_fallthru
      _
    // Predicated region
    $region26: #{policy_forward.1} parent=1 // pred_check
      _
    $region27: #{policy_forward.1} parent=1 // pred_check_branch
      %55 = sbr.rel (0) target = $region29
    $region28: #{policy_forward.1} parent=1 // pred_region
      %56 = dma.done [#allocation6], 2048
    $region29: #{policy_forward.1} parent=1 // pred_fallthru
      _
    // Predicated region
    $region30: #{policy_forward.1} parent=1 // pred_check
      _
    $region31: #{policy_forward.1} parent=1 // pred_check_branch
      %58 = sbr.rel (0) target = $region33
    $region32: #{policy_forward.1} parent=1 // pred_region
      %59 = dma.done [#allocation6], 2048
    $region33: #{policy_forward.1} parent=1 // pred_fallthru
      _
    %v61 = vld [vmem:[#allocation2] sm:$0x3]
    %v62 = vpack.c.bf16 %v61, %v61
    %v63 = vld [vmem:[#allocation5] sm:$0xff]
    %v64 = vld [vmem:[#allocation5 + $0x8] sm:$0xff]
    %v65 = vld [vmem:[#allocation5 + $0x10] sm:$0xff]
    %v66 = vld [vmem:[#allocation5 + $0x18] sm:$0xff]
    %v67 = vld [vmem:[#allocation5 + $0x20] sm:$0xff]
    %v68 = vld [vmem:[#allocation5 + $0x28] sm:$0xff]
    %v69 = vld [vmem:[#allocation5 + $0x30] sm:$0xff]
    %v70 = vld [vmem:[#allocation5 + $0x38] sm:$0xff]
    %v71 = vld [vmem:[#allocation5 + $0x40] sm:$0xff]
    %v72 = vld [vmem:[#allocation5 + $0x48] sm:$0xff]
    %v73 = vld [vmem:[#allocation5 + $0x50] sm:$0xff]
    %v74 = vld [vmem:[#allocation5 + $0x58] sm:$0xff]
    %v75 = vld [vmem:[#allocation5 + $0x60] sm:$0xff]
    %v76 = vld [vmem:[#allocation5 + $0x68] sm:$0xff]
    %v77 = vld [vmem:[#allocation5 + $0x70] sm:$0xff]
    %v78 = vld [vmem:[#allocation5 + $0x78] sm:$0x11]
    %v79 = vld [vmem:[%s2] sm:$0x3]
    %v81 = vlaneseq
    %v82 = vshrl.u32 %v81, 7
    %v83 = vsub.s32 0, %v82
    %v84 = vrot.slane %v79, %v83
    %v85 = vlaneseq
    %v86 = vshrl.u32 %v85, 7
    %v87 = vsub.s32 1, %v86
    %v88 = vrot.slane %v79, %v87
    %v107 = vunpack.c.l.b16 %v63
    %v108 = vunpack.c.h.b16 %v63
    %v109 = vunpack.c.l.b16 %v64
    %v110 = vunpack.c.h.b16 %v64
    %v111 = vunpack.c.l.b16 %v65
    %v112 = vunpack.c.h.b16 %v65
    %v113 = vunpack.c.l.b16 %v66
    %v114 = vunpack.c.h.b16 %v66
    %v115 = vunpack.c.l.b16 %v67
    %v116 = vunpack.c.h.b16 %v67
    %v117 = vunpack.c.l.b16 %v68
    %v118 = vunpack.c.h.b16 %v68
    %v119 = vunpack.c.l.b16 %v69
    %v120 = vunpack.c.h.b16 %v69
    %v121 = vunpack.c.l.b16 %v70
    %v122 = vunpack.c.h.b16 %v70
    %v123 = vunpack.c.l.b16 %v71
    %v124 = vunpack.c.h.b16 %v71
    %v125 = vunpack.c.l.b16 %v72
    %v126 = vunpack.c.h.b16 %v72
    %v127 = vunpack.c.l.b16 %v73
    %v128 = vunpack.c.h.b16 %v73
    %v129 = vunpack.c.l.b16 %v74
    %v130 = vunpack.c.h.b16 %v74
    %v131 = vunpack.c.l.b16 %v75
    %v132 = vunpack.c.h.b16 %v75
    %v133 = vunpack.c.l.b16 %v76
    %v134 = vunpack.c.h.b16 %v76
    %v135 = vunpack.c.l.b16 %v77
    %v136 = vunpack.c.h.b16 %v77
    %v137 = vunpack.c.l.b16 %v78
    %v138 = vunpack.c.h.b16 %v78
    %v139 = vpack.c.b16 %v109, %v107
    %v140 = vpack.c.b16 %v110, %v108
    %v141 = vpack.c.b16 %v113, %v111
    %v142 = vpack.c.b16 %v114, %v112
    %v143 = vpack.c.b16 %v117, %v115
    %v144 = vpack.c.b16 %v118, %v116
    %v145 = vpack.c.b16 %v121, %v119
    %v146 = vpack.c.b16 %v122, %v120
    %v147 = vpack.c.b16 %v125, %v123
    %v148 = vpack.c.b16 %v126, %v124
    %v149 = vpack.c.b16 %v129, %v127
    %v150 = vpack.c.b16 %v130, %v128
    %v151 = vpack.c.b16 %v133, %v131
    %v152 = vpack.c.b16 %v134, %v132
    %v153 = vpack.c.b16 %v137, %v135
    %v154 = vpack.c.b16 %v138, %v136
    %vm169 = vcmask 998400
    %v171 = vsel %vm169, %v62, 0
    %vm173 = vcmask 1044480
    %v175 = vsel %vm173, %v153, 0
    %v178 = vsel %vm173, %v154, 0
    %180 = vmatprep.subr.bf16.mxu0 %v178
    %181 = vmatpush1.bf16.msra.mxu0 %v175
    %182 = vmatprep.subr.bf16.mxu0 %v152
    %183 = vmatpush1.bf16.msra.mxu0 %v151
    %184 = vmatprep.subr.bf16.mxu0 %v150
    %185 = vmatpush1.bf16.msra.mxu0 %v149
    %186 = vmatprep.subr.bf16.mxu0 %v148
    %187 = vmatpush1.bf16.msra.mxu0 %v147
    %188 = vmatprep.subr.bf16.mxu0 %v146
    %189 = vmatpush1.bf16.msra.mxu0 %v145
    %190 = vmatprep.subr.bf16.mxu0 %v144
    %191 = vmatpush1.bf16.msra.mxu0 %v143
    %192 = vmatprep.subr.bf16.mxu0 %v142
    %193 = vmatpush1.bf16.msra.mxu0 %v141
    %194 = vmatprep.subr.bf16.mxu0 %v140
    %195 = vmatpush1.bf16.msra.mxu0 %v139
    %196 = vmatprep.subr.bf16.mxu0 0
    %197 = vmatpush2.bf16.msra.mxu0 0
    %198 = vmatprep.subr.bf16.mxu0 0
    %199 = vmatpush2.bf16.msra.mxu0 0
    %200 = vmatprep.subr.bf16.mxu0 0
    %201 = vmatpush2.bf16.msra.mxu0 0
    %202 = vmatprep.subr.bf16.mxu0 0
    %203 = vmatpush2.bf16.msra.mxu0 0
    %204 = vmatprep.subr.bf16.mxu0 0
    %205 = vmatpush2.bf16.msra.mxu0 0
    %206 = vmatprep.subr.bf16.mxu0 0
    %207 = vmatpush2.bf16.msra.mxu0 0
    %208 = vmatprep.subr.bf16.mxu0 0
    %209 = vmatpush2.bf16.msra.mxu0 0
    %210 = vmatprep.subr.bf16.mxu0 0
    %211 = vmatpush2.bf16.msra.mxu0 0
    %212 = vmatprep.mubr.bf16.mxu0 0
    %213 = vmatmul.mubr.bf16.gmra.mxu0 %v171
    %v214 = vpop.f32.mrf.mxu0
    %v215 = vadd.f32 %v84, %v214
    %v216 = vpop.f32.mrf.mxu0
    %v217 = vadd.f32 %v88, %v216
    %v218 = vpop.f32.mrf.mxu0
    %v219 = vpop.f32.mrf.mxu0
    %220 = vdwg.mxu0
    %v221 = vmax.f32 %v215, 0.0
    %v222 = vmax.f32 %v217, 0.0
    %v223 = vpack.c.bf16 %v221, %v221
    %v224 = vpack.c.bf16 %v222, %v222
    %v225 = vld [vmem:[#allocation7] sm:$0xf]
    %v226 = vld [vmem:[#allocation7 + $0x4] sm:$0xf]
    %v227 = vld [vmem:[#allocation7 + $0x8] sm:$0xf]
    %v228 = vld [vmem:[#allocation7 + $0xc] sm:$0xf]
    %v229 = vld [vmem:[#allocation7 + $0x10] sm:$0xf]
    %v230 = vld [vmem:[#allocation7 + $0x14] sm:$0xf]
    %v231 = vld [vmem:[#allocation7 + $0x18] sm:$0xf]
    %v232 = vld [vmem:[#allocation7 + $0x1c] sm:$0xf]
    %v233 = vld [vmem:[#allocation7 + $0x20] sm:$0xf]
    %v234 = vld [vmem:[#allocation7 + $0x24] sm:$0xf]
    %v235 = vld [vmem:[#allocation7 + $0x28] sm:$0xf]
    %v236 = vld [vmem:[#allocation7 + $0x2c] sm:$0xf]
    %v237 = vld [vmem:[#allocation7 + $0x30] sm:$0xf]
    %v238 = vld [vmem:[#allocation7 + $0x34] sm:$0xf]
    %v239 = vld [vmem:[#allocation7 + $0x38] sm:$0xf]
    %v240 = vld [vmem:[#allocation7 + $0x3c] sm:$0xf]
    %v241 = vld [vmem:[#allocation7 + $0x40] sm:$0xf]
    %v242 = vld [vmem:[#allocation7 + $0x44] sm:$0xf]
    %v243 = vld [vmem:[#allocation7 + $0x48] sm:$0xf]
    %v244 = vld [vmem:[#allocation7 + $0x4c] sm:$0xf]
    %v245 = vld [vmem:[#allocation7 + $0x50] sm:$0xf]
    %v246 = vld [vmem:[#allocation7 + $0x54] sm:$0xf]
    %v247 = vld [vmem:[#allocation7 + $0x58] sm:$0xf]
    %v248 = vld [vmem:[#allocation7 + $0x5c] sm:$0xf]
    %v249 = vld [vmem:[#allocation7 + $0x60] sm:$0xf]
    %v250 = vld [vmem:[#allocation7 + $0x64] sm:$0xf]
    %v251 = vld [vmem:[#allocation7 + $0x68] sm:$0xf]
    %v252 = vld [vmem:[#allocation7 + $0x6c] sm:$0xf]
    %v253 = vld [vmem:[#allocation7 + $0x70] sm:$0xf]
    %v254 = vld [vmem:[#allocation7 + $0x74] sm:$0xf]
    %v255 = vld [vmem:[#allocation7 + $0x78] sm:$0xf]
    %v256 = vld [vmem:[#allocation7 + $0x7c] sm:$0xf]
    %v257 = vld [vmem:[%s4] sm:$0x1]
    %v259 = vlaneseq
    %v260 = vshrl.u32 %v259, 7
    %v261 = vsub.s32 0, %v260
    %v262 = vrot.slane %v257, %v261
    %v296 = vunpack.c.l.b16 %v225
    %v297 = vunpack.c.l.b16 %v226
    %v298 = vunpack.c.l.b16 %v227
    %v299 = vunpack.c.l.b16 %v228
    %v300 = vunpack.c.l.b16 %v229
    %v301 = vunpack.c.l.b16 %v230
    %v302 = vunpack.c.l.b16 %v231
    %v303 = vunpack.c.l.b16 %v232
    %v304 = vunpack.c.l.b16 %v233
    %v305 = vunpack.c.l.b16 %v234
    %v306 = vunpack.c.l.b16 %v235
    %v307 = vunpack.c.l.b16 %v236
    %v308 = vunpack.c.l.b16 %v237
    %v309 = vunpack.c.l.b16 %v238
    %v310 = vunpack.c.l.b16 %v239
    %v311 = vunpack.c.l.b16 %v240
    %v312 = vunpack.c.l.b16 %v241
    %v313 = vunpack.c.l.b16 %v242
    %v314 = vunpack.c.l.b16 %v243
    %v315 = vunpack.c.l.b16 %v244
    %v316 = vunpack.c.l.b16 %v245
    %v317 = vunpack.c.l.b16 %v246
    %v318 = vunpack.c.l.b16 %v247
    %v319 = vunpack.c.l.b16 %v248
    %v320 = vunpack.c.l.b16 %v249
    %v321 = vunpack.c.l.b16 %v250
    %v322 = vunpack.c.l.b16 %v251
    %v323 = vunpack.c.l.b16 %v252
    %v324 = vunpack.c.l.b16 %v253
    %v325 = vunpack.c.l.b16 %v254
    %v326 = vunpack.c.l.b16 %v255
    %v327 = vunpack.c.l.b16 %v256
    %v328 = vpack.c.b16 %v297, %v296
    %v329 = vpack.c.b16 %v299, %v298
    %v330 = vpack.c.b16 %v301, %v300
    %v331 = vpack.c.b16 %v303, %v302
    %v332 = vpack.c.b16 %v305, %v304
    %v333 = vpack.c.b16 %v307, %v306
    %v334 = vpack.c.b16 %v309, %v308
    %v335 = vpack.c.b16 %v311, %v310
    %v336 = vpack.c.b16 %v313, %v312
    %v337 = vpack.c.b16 %v315, %v314
    %v338 = vpack.c.b16 %v317, %v316
    %v339 = vpack.c.b16 %v319, %v318
    %v340 = vpack.c.b16 %v321, %v320
    %v341 = vpack.c.b16 %v323, %v322
    %v342 = vpack.c.b16 %v325, %v324
    %v343 = vpack.c.b16 %v327, %v326
    %360 = vmatprep.subr.bf16.mxu0 0
    %361 = vmatpush1.bf16.msra.mxu0 %v335
    %362 = vmatprep.subr.bf16.mxu0 0
    %363 = vmatpush1.bf16.msra.mxu0 %v334
    %364 = vmatprep.subr.bf16.mxu0 0
    %365 = vmatpush1.bf16.msra.mxu0 %v333
    %366 = vmatprep.subr.bf16.mxu0 0
    %367 = vmatpush1.bf16.msra.mxu0 %v332
    %368 = vmatprep.subr.bf16.mxu0 0
    %369 = vmatpush1.bf16.msra.mxu0 %v331
    %370 = vmatprep.subr.bf16.mxu0 0
    %371 = vmatpush1.bf16.msra.mxu0 %v330
    %372 = vmatprep.subr.bf16.mxu0 0
    %373 = vmatpush1.bf16.msra.mxu0 %v329
    %374 = vmatprep.subr.bf16.mxu0 0
    %375 = vmatpush1.bf16.msra.mxu0 %v328
    %376 = vmatprep.subr.bf16.mxu0 0
    %377 = vmatpush2.bf16.msra.mxu0 %v343
    %378 = vmatprep.subr.bf16.mxu0 0
    %379 = vmatpush2.bf16.msra.mxu0 %v342
    %380 = vmatprep.subr.bf16.mxu0 0
    %381 = vmatpush2.bf16.msra.mxu0 %v341
    %382 = vmatprep.subr.bf16.mxu0 0
    %383 = vmatpush2.bf16.msra.mxu0 %v340
    %384 = vmatprep.subr.bf16.mxu0 0
    %385 = vmatpush2.bf16.msra.mxu0 %v339
    %386 = vmatprep.subr.bf16.mxu0 0
    %387 = vmatpush2.bf16.msra.mxu0 %v338
    %388 = vmatprep.subr.bf16.mxu0 0
    %389 = vmatpush2.bf16.msra.mxu0 %v337
    %390 = vmatprep.subr.bf16.mxu0 0
    %391 = vmatpush2.bf16.msra.mxu0 %v336
    %392 = vmatprep.mubr.bf16.mxu0 %v224
    %393 = vmatmul.mubr.bf16.gmra.mxu0 %v223
    %v394 = vpop.f32.mrf.mxu0
    %v395 = vadd.f32 %v262, %v394
    %v396 = vpop.f32.mrf.mxu0
    %v397 = vpop.f32.mrf.mxu0
    %v398 = vpop.f32.mrf.mxu0
    %399 = vdwg.mxu0
    %vm400 = vcmask 1041408
    %v401 = vsel %vm400, %v395, -inf
    %402 = vmax.xlane.f32.xlu0 %v401
    %v403 = vpop.xlane.xlu0 %402
    %v404 = vsub.f32 %v395, %v403
    %v405 = vmul.f32 %v404, 1.442695
    %v406 = vpow.pop %v405
    %v407 = vsel %vm400, %v406, 0.0
    %408 = vadd.xlane.f32.xlu0 %v407
    %v409 = vpop.xlane.xlu0 %408
    %v410 = vrcp.pop %v409
    %v411 = vmul.f32 %v406, %v410
    %412 = vst [vmem:[#allocation8] sm:$0x3] %v411
    // Predicated region
    $region34: #{policy_forward.1} parent=1 // pred_check
      _
    $region35: #{policy_forward.1} parent=1 // pred_check_branch
      %414 = sbr.rel (0) target = $region37
    $region36: #{policy_forward.1} parent=1 // pred_region
      %s416 = ssub.s32 32, 32
      %417 = vsyncadd [#allocation4], %s416
      %s419 = sshll.u32 [#allocation8], 4
      %s420 = int_to_ptr.vmem [resolvable:$true] %s419
      %422 = dma.vmem_to_hbm [thread:$0]  %s420, 32, %s5, [#allocation4]
    $region37: #{policy_forward.1} parent=1 // pred_fallthru
      _
    // Predicated region
    $region38: #{policy_forward.1} parent=1 // pred_check
      _
    $region39: #{policy_forward.1} parent=1 // pred_check_branch
      %424 = sbr.rel (0) target = $region41
    $region40: #{policy_forward.1} parent=1 // pred_region
      %425 = dma.done [#allocation4], 32
    $region41: #{policy_forward.1} parent=1 // pred_fallthru
      _
    %426 = vsyncpa [#allocation3], 1
    %427 = vsyncpa [#allocation6], 1
    %428 = vsyncpa [#allocation4], 1

</llo_original>
